<compile_context>
chip_gen: v7x
topology: tpu7x:2x2x1
jax: 0.10.0
libtpu: 0.0.40
codegen_flags: <defaults>
</compile_context>

<pallas_src>
import functools

import jax
import jax.numpy as jnp
import numpy as np
from jax import lax
from jax.experimental import pallas as pl
from jax.experimental.pallas import tpu as pltpu


def _round_up(x, m):
    return ((x + m - 1) // m) * m


def _prep_kernel(s_ref, t_ref, feats_ref, tgt_ref, *, inv_t2, b, d):
    """Normalize rows; emit stacked+padded keys and per-row target logits."""
    eps2 = jnp.float32(1e-24)  # (F.normalize eps = 1e-12) squared

    # Zero-fill padding once, then masked-store the valid sub-blocks.
    feats_ref[...] = jnp.zeros_like(feats_ref)
    tgt_ref[...] = jnp.zeros_like(tgt_ref)

    s = s_ref[...].astype(jnp.float32)
    t = t_ref[...].astype(jnp.float32)
    # max(||x||, eps) == sqrt(max(||x||^2, eps^2))  ->  single EUP rsqrt.
    s_n = s * lax.rsqrt(jnp.maximum(jnp.sum(s * s, axis=-1, keepdims=True), eps2))
    t_n = t * lax.rsqrt(jnp.maximum(jnp.sum(t * t, axis=-1, keepdims=True), eps2))

    feats_ref[0:b, 0:d] = s_n
    feats_ref[b:2 * b, 0:d] = t_n

    # Target logit (s_i . t_i) / T^2 — same value for row i and row i+B.
    tgt = jnp.sum(s_n * t_n, axis=-1, keepdims=True) * jnp.float32(inv_t2)
    tgt_ref[0:b, :] = tgt
    tgt_ref[b:2 * b, :] = tgt


def _ntxent_tile_kernel(k_ref, tgt_ref, loss_ref, *, inv_t2, n_valid):
    """One [TR, n_pad] logits slab: matmul, mask, scaled softmax-CE per row."""
    tr = loss_ref.shape[0]
    n_pad = k_ref.shape[0]
    i = pl.program_id(0)

    # Query rows are a slice of the resident key block — no extra input DMA.
    row0 = pl.multiple_of(i * tr, tr)
    q = k_ref[pl.ds(row0, tr), :]       # [TR, Dp] f32, already normalized
    k = k_ref[...]                      # [Np, Dp] f32, resident across grid
    sim = lax.dot_general(
        q, k,
        dimension_numbers=(((1,), (1,)), ((), ())),
        preferred_element_type=jnp.float32)            # [TR, Np] on the MXU

    # Two temperature divisions folded into one multiply; diagonal zeroed
    # AFTER scaling (PyTorch zeroes the masked sim, so its logit is exactly 0).
    logits = sim * jnp.float32(inv_t2)
    col = lax.broadcasted_iota(jnp.int32, (tr, n_pad), 1)
    row = i * tr + lax.broadcasted_iota(jnp.int32, (tr, 1), 0)
    logits = jnp.where(col == row, jnp.float32(0.0), logits)
    if n_valid < n_pad:  # kill padded key columns (trace-time decision)
        logits = jnp.where(col >= n_valid, jnp.float32(-1e30), logits)

    # Max-subtracted logsumexp (logits reach ~1/T^2 ~ 204; raw exp overflows).
    m = jnp.max(logits, axis=-1, keepdims=True)
    lse = m + jnp.log(jnp.sum(jnp.exp(logits - m), axis=-1, keepdims=True))
    loss_ref[...] = lse - tgt_ref[...]


def ntxent_loss(student_features, teacher_features, temperature=0.07):
    """Pallas implementation of NTXentLoss.forward. Returns a scalar f32."""
    assert student_features.shape == teacher_features.shape
    b, d = student_features.shape
    n = 2 * b
    inv_t2 = 1.0 / (float(temperature) * float(temperature))

    d_pad = _round_up(d, 128)                 # lane / MXU contraction dim
    tr = min(256, _round_up(n, 8))            # row tile (f32 sublane multiple)
    n_pad = _round_up(n, tr)
    num_tiles = n_pad // tr

    # Stage 1: normalization + stacked/padded keys + per-pair target logit.
    feats, tgt = pl.pallas_call(
        functools.partial(_prep_kernel, inv_t2=inv_t2, b=b, d=d),
        out_shape=(
            jax.ShapeDtypeStruct((n_pad, d_pad), jnp.float32),
            jax.ShapeDtypeStruct((n_pad, 1), jnp.float32),
        ),
        in_specs=[pl.BlockSpec(memory_space=pltpu.MemorySpace.VMEM)] * 2,
        out_specs=(pl.BlockSpec(memory_space=pltpu.MemorySpace.VMEM),) * 2,
    )(student_features, teacher_features)

    # Stage 2: tiled row loop; keys resident (constant index_map -> one DMA).
    per_row = pl.pallas_call(
        functools.partial(_ntxent_tile_kernel, inv_t2=inv_t2, n_valid=n),
        out_shape=jax.ShapeDtypeStruct((n_pad, 1), jnp.float32),
        grid_spec=pltpu.PrefetchScalarGridSpec(
            num_scalar_prefetch=0,
            grid=(num_tiles,),
            in_specs=[
                pl.BlockSpec((n_pad, d_pad), lambda i: (0, 0)),   # resident keys
                pl.BlockSpec((tr, 1), lambda i: (i, 0)),          # target logits
            ],
            out_specs=pl.BlockSpec((tr, 1), lambda i: (i, 0)),
        ),
        compiler_params=pltpu.CompilerParams(
            dimension_semantics=("parallel",)),                   # 2 TCs on v7x
        cost_estimate=pl.CostEstimate(
            flops=2 * n_pad * n_pad * d_pad,
            transcendentals=n_pad * n_pad,
            bytes_accessed=n_pad * d_pad * 4 + 2 * n_pad * 4),
    )(feats, tgt)

    return jnp.sum(per_row[:n, 0]) / jnp.float32(n)


def _ntxent_loss_ref(student, teacher, temperature=0.07):
    """Pure-JAX reference mirroring the PyTorch module exactly."""
    eps = 1e-12
    s = student / jnp.maximum(jnp.linalg.norm(student, axis=-1, keepdims=True), eps)
    t = teacher / jnp.maximum(jnp.linalg.norm(teacher, axis=-1, keepdims=True), eps)
    feats = jnp.concatenate([s, t], axis=0)
    n = feats.shape[0]
    b = n // 2
    sim = (feats @ feats.T) / temperature
    mask = 1.0 - jnp.eye(n, dtype=jnp.float32)
    sim = sim * mask
    logits = sim / temperature
    labels = jnp.concatenate([jnp.arange(b) + b, jnp.arange(b)])
    logp = jax.nn.log_softmax(logits, axis=-1)
    return -jnp.mean(logp[jnp.arange(n), labels])


if __name__ == "__main__":
    batch, feature_dim = 8, 32
    key = jax.random.PRNGKey(0)
    k_s, k_t = jax.random.split(key)
    student = jax.random.normal(k_s, (batch, feature_dim), dtype=jnp.float32)
    teacher = jax.random.normal(k_t, (batch, feature_dim), dtype=jnp.float32)

    loss = jax.block_until_ready(ntxent_loss(student, teacher, temperature=0.07))
    ref = jax.block_until_ready(_ntxent_loss_ref(student, teacher, temperature=0.07))

    assert np.isfinite(float(loss))
    np.testing.assert_allclose(float(loss), float(ref), rtol=1e-4, atol=1e-4)
    print("KERNEL_OK")
</pallas_src>

<mosaic_0001>
module attributes {stable_mosaic.version = 11 : i64} {
  func.func @_prep_kernel(%arg0: memref<8x32xf32, #tpu.memory_space<vmem>>, %arg1: memref<8x32xf32, #tpu.memory_space<vmem>>, %arg2: memref<16x128xf32, #tpu.memory_space<vmem>>, %arg3: memref<16x1xf32, #tpu.memory_space<vmem>>) attributes {dimension_semantics = [], scalar_prefetch = 0 : i64, scratch_operands = 0 : i64, tpu.core_type = #tpu.core_type<tc>} {
    %cst = arith.constant 0.000000e+00 : f32
    %0 = vector.broadcast %cst : f32 to vector<16x128xf32>
    %c0 = arith.constant 0 : index
    %c0_0 = arith.constant 0 : index
    %1 = vector.load %arg2[%c0, %c0_0] : memref<16x128xf32, #tpu.memory_space<vmem>>, vector<16x128xf32>
    tpu.vector_store %arg2[%c0, %c0_0], %0 {strides = array<i32>} : memref<16x128xf32, #tpu.memory_space<vmem>>, vector<16x128xf32>,
    %cst_1 = arith.constant 0.000000e+00 : f32
    %2 = vector.broadcast %cst_1 : f32 to vector<16x1xf32>
    %c0_2 = arith.constant 0 : index
    %c0_3 = arith.constant 0 : index
    %3 = vector.load %arg3[%c0_2, %c0_3] : memref<16x1xf32, #tpu.memory_space<vmem>>, vector<16x1xf32>
    tpu.vector_store %arg3[%c0_2, %c0_3], %2 {strides = array<i32>} : memref<16x1xf32, #tpu.memory_space<vmem>>, vector<16x1xf32>,
    %c0_4 = arith.constant 0 : index
    %c0_5 = arith.constant 0 : index
    %4 = vector.load %arg0[%c0_4, %c0_5] : memref<8x32xf32, #tpu.memory_space<vmem>>, vector<8x32xf32>
    %c0_6 = arith.constant 0 : index
    %c0_7 = arith.constant 0 : index
    %5 = vector.load %arg1[%c0_6, %c0_7] : memref<8x32xf32, #tpu.memory_space<vmem>>, vector<8x32xf32>
    %6 = arith.mulf %4, %4 : vector<8x32xf32>
    %cst_8 = arith.constant dense<0.000000e+00> : vector<8xf32>
    %7 = vector.multi_reduction <add>, %6, %cst_8 [1] : vector<8x32xf32> to vector<8xf32>
    %8 = vector.shape_cast %7 : vector<8xf32> to vector<8x1xf32>
    %cst_9 = arith.constant 1.000000e-24 : f32
    %9 = vector.broadcast %cst_9 : f32 to vector<8x1xf32>
    %10 = arith.maximumf %8, %9 : vector<8x1xf32>
    %11 = math.rsqrt %10 : vector<8x1xf32>
    %12 = vector.broadcast %11 : vector<8x1xf32> to vector<8x32xf32>
    %13 = arith.mulf %4, %12 : vector<8x32xf32>
    %14 = arith.mulf %5, %5 : vector<8x32xf32>
    %cst_10 = arith.constant dense<0.000000e+00> : vector<8xf32>
    %15 = vector.multi_reduction <add>, %14, %cst_10 [1] : vector<8x32xf32> to vector<8xf32>
    %16 = vector.shape_cast %15 : vector<8xf32> to vector<8x1xf32>
    %cst_11 = arith.constant 1.000000e-24 : f32
    %17 = vector.broadcast %cst_11 : f32 to vector<8x1xf32>
    %18 = arith.maximumf %16, %17 : vector<8x1xf32>
    %19 = math.rsqrt %18 : vector<8x1xf32>
    %20 = vector.broadcast %19 : vector<8x1xf32> to vector<8x32xf32>
    %21 = arith.mulf %5, %20 : vector<8x32xf32>
    %c0_12 = arith.constant 0 : index
    %c0_13 = arith.constant 0 : index
    %22 = vector.load %arg2[%c0_12, %c0_13] : memref<16x128xf32, #tpu.memory_space<vmem>>, vector<8x32xf32>
    tpu.vector_store %arg2[%c0_12, %c0_13], %13 {strides = array<i32>} : memref<16x128xf32, #tpu.memory_space<vmem>>, vector<8x32xf32>,
    %c8 = arith.constant 8 : index
    %c0_14 = arith.constant 0 : index
    %23 = vector.load %arg2[%c8, %c0_14] : memref<16x128xf32, #tpu.memory_space<vmem>>, vector<8x32xf32>
    tpu.vector_store %arg2[%c8, %c0_14], %21 {strides = array<i32>} : memref<16x128xf32, #tpu.memory_space<vmem>>, vector<8x32xf32>,
    %24 = arith.mulf %13, %21 : vector<8x32xf32>
    %cst_15 = arith.constant dense<0.000000e+00> : vector<8xf32>
    %25 = vector.multi_reduction <add>, %24, %cst_15 [1] : vector<8x32xf32> to vector<8xf32>
    %26 = vector.shape_cast %25 : vector<8xf32> to vector<8x1xf32>
    %cst_16 = arith.constant 204.081635 : f32
    %27 = vector.broadcast %cst_16 : f32 to vector<8x1xf32>
    %28 = arith.mulf %26, %27 : vector<8x1xf32>
    %c0_17 = arith.constant 0 : index
    %c0_18 = arith.constant 0 : index
    %29 = vector.load %arg3[%c0_17, %c0_18] : memref<16x1xf32, #tpu.memory_space<vmem>>, vector<8x1xf32>
    tpu.vector_store %arg3[%c0_17, %c0_18], %28 {strides = array<i32>} : memref<16x1xf32, #tpu.memory_space<vmem>>, vector<8x1xf32>,
    %c8_19 = arith.constant 8 : index
    %c0_20 = arith.constant 0 : index
    %30 = vector.load %arg3[%c8_19, %c0_20] : memref<16x1xf32, #tpu.memory_space<vmem>>, vector<8x1xf32>
    tpu.vector_store %arg3[%c8_19, %c0_20], %28 {strides = array<i32>} : memref<16x1xf32, #tpu.memory_space<vmem>>, vector<8x1xf32>,
    return
  }
}

</mosaic_0001>

<llo_original>
// kernel: tpu_custom_call.1
$region0: #{tpu_custom_call.1}
  #allocation0 [shape = 'u32[]', space=smem, size = 0x4, offset = 0x4, fixed_abs, tag = 'smem constant byte address 0x4 - core index']
  #allocation1 [shape = 'u32[144,128]{1,0:T(1,128)}', space=vmem, size = 0x12000, scoped, tag = 'internal scratch']
  %s0 = inlined_call_operand.hbm [shape: f32[8,32], index: 0, kind: input, shape index: {}]
  %s1 = inlined_call_operand.hbm [shape: f32[8,32], index: 1, kind: input, shape index: {}]
  %s2 = inlined_call_operand.hbm [shape: f32[16,128], index: 2, kind: output, shape index: {0}]
  %s3 = inlined_call_operand.vmem [shape: f32[16,1], index: 3, kind: output, shape index: {1}]
  %4 = xla_tuple %s2, %s3
  %s5 = sld [smem:[#allocation0]]
  $region34: #{tpu_custom_call.1} parent=0
    _
  %s7 = ssub.s32 1, %s5
  %s8 = scalar_select 0, %s7, %s5
  $region1: #{tpu_custom_call.1} parent=0
    #allocation2 [shape = 'u8[4096]{0}', space=vmem, size = 0x1000, scoped, tag = 'input window, operand 0, single buffered']
    #allocation3 [shape = 's32[1]{0}', space=sflag, size = 0x4, scoped, tag = 'scoped memory for tpu_custom_call.1']
    #allocation4 [shape = 's32[1]{0}', space=sflag, size = 0x4, scoped, tag = 'scoped memory for tpu_custom_call.1']
    #allocation5 [shape = 'u8[4096]{0}', space=vmem, size = 0x1000, scoped, tag = 'input window, operand 1, single buffered']
    #allocation6 [shape = 's32[1]{0}', space=sflag, size = 0x4, scoped, tag = 'scoped memory for tpu_custom_call.1']
    #allocation7 [shape = 'u8[8192]{0}', space=vmem, size = 0x2000, scoped, tag = 'output window, operand 0, single buffered']
    %9 = vsyncpa [#allocation3], 0
    %10 = vsyncpa [#allocation6], 0
    %11 = vsyncpa [#allocation4], 0
    // Predicated region
    $region2: #{tpu_custom_call.1} parent=1 // pred_check
      _
    $region3: #{tpu_custom_call.1} parent=1 // pred_check_branch
      %13 = sbr.rel (0) target = $region5
    $region4: #{tpu_custom_call.1} parent=1 // pred_region
      %s15 = ssub.s32 128, 128
      %16 = vsyncadd [#allocation3], %s15
      %s18 = sshll.u32 [#allocation2], 4
      %s19 = int_to_ptr.vmem [resolvable:$true] %s18
      %21 = dma.hbm_to_vmem [thread:$0]  %s0, 128, %s19, [#allocation3]
    $region5: #{tpu_custom_call.1} parent=1 // pred_fallthru
      _
    // Predicated region
    $region6: #{tpu_custom_call.1} parent=1 // pred_check
      _
    $region7: #{tpu_custom_call.1} parent=1 // pred_check_branch
      %23 = sbr.rel (0) target = $region9
    $region8: #{tpu_custom_call.1} parent=1 // pred_region
      %s25 = ssub.s32 128, 128
      %26 = vsyncadd [#allocation6], %s25
      %s28 = sshll.u32 [#allocation5], 4
      %s29 = int_to_ptr.vmem [resolvable:$true] %s28
      %31 = dma.hbm_to_vmem [thread:$0]  %s1, 128, %s29, [#allocation6]
    $region9: #{tpu_custom_call.1} parent=1 // pred_fallthru
      _
    // Predicated region
    $region10: #{tpu_custom_call.1} parent=1 // pred_check
      _
    $region11: #{tpu_custom_call.1} parent=1 // pred_check_branch
      %33 = sbr.rel (0) target = $region13
    $region12: #{tpu_custom_call.1} parent=1 // pred_region
      %34 = dma.done [#allocation3], 128
    $region13: #{tpu_custom_call.1} parent=1 // pred_fallthru
      _
    // Predicated region
    $region14: #{tpu_custom_call.1} parent=1 // pred_check
      _
    $region15: #{tpu_custom_call.1} parent=1 // pred_check_branch
      %36 = sbr.rel (0) target = $region17
    $region16: #{tpu_custom_call.1} parent=1 // pred_region
      %37 = dma.done [#allocation6], 128
    $region17: #{tpu_custom_call.1} parent=1 // pred_fallthru
      _
    %38 = vst [vmem:[#allocation7] sm:$0xff] 0.0
    %39 = vst [vmem:[#allocation7 + $0x8] sm:$0xff] 0.0
    %vm40 = vcmask 7168
    %41 = vst.msk [vmem:[%s3] sm:$0xff] %vm40, 0.0
    %42 = vst.msk [vmem:[%s3 + $0x8] sm:$0xff] %vm40, 0.0
    %v43 = vld [vmem:[#allocation2] sm:$0xff]
    %v44 = vld [vmem:[#allocation5] sm:$0xff]
    %v45 = vmul.f32 %v43, %v43
    %vm46 = vcmask 261120
    %v47 = vsel %vm46, %v45, 0.0
    %48 = vadd.xlane.f32.xlu0 %v47
    %v49 = vpop.xlane.xlu0 %48
    %v50 = vmax.f32 %v49, 1e-24
    %v51 = vrsqrt.pop %v50
    %v52 = vmul.f32 %v43, %v51
    %v53 = vmul.f32 %v44, %v44
    %v54 = vsel %vm46, %v53, 0.0
    %55 = vadd.xlane.f32.xlu0 %v54
    %v56 = vpop.xlane.xlu0 %55
    %v57 = vmax.f32 %v56, 1e-24
    %v58 = vrsqrt.pop %v57
    %v59 = vmul.f32 %v44, %v58
    %60 = vst.msk [vmem:[#allocation7] sm:$0xff] %vm46, %v52
    %61 = vst.msk [vmem:[#allocation7 + $0x8] sm:$0xff] %vm46, %v59
    %v62 = vmul.f32 %v52, %v59
    %v63 = vsel %vm46, %v62, 0.0
    %64 = vadd.xlane.f32.xlu0 %v63
    %v65 = vpop.xlane.xlu0 %64
    %v66 = vmul.f32 %v65, 204.08163
    %67 = vst.msk [vmem:[%s3] sm:$0xff] %vm40, %v66
    %68 = vst.msk [vmem:[%s3 + $0x8] sm:$0xff] %vm40, %v66
    // Predicated region
    $region18: #{tpu_custom_call.1} parent=1 // pred_check
      _
    $region19: #{tpu_custom_call.1} parent=1 // pred_check_branch
      %70 = sbr.rel (0) target = $region21
    $region20: #{tpu_custom_call.1} parent=1 // pred_region
      %s72 = ssub.s32 256, 256
      %73 = vsyncadd [#allocation4], %s72
      %s74 = sshll.u32 [#allocation7], 4
      %s75 = int_to_ptr.vmem [resolvable:$true] %s74
      %80 = dma.vmem_to_hbm [thread:$0]  %s75, 256, %s2, [#allocation4], 128, 128, 8
    $region21: #{tpu_custom_call.1} parent=1 // pred_fallthru
      _
    // Predicated region
    $region22: #{tpu_custom_call.1} parent=1 // pred_check
      _
    $region23: #{tpu_custom_call.1} parent=1 // pred_check_branch
      %82 = sbr.rel (0) target = $region25
    $region24: #{tpu_custom_call.1} parent=1 // pred_region
      _
    $region25: #{tpu_custom_call.1} parent=1 // pred_fallthru
      _
    // Predicated region
    $region26: #{tpu_custom_call.1} parent=1 // pred_check
      _
    $region27: #{tpu_custom_call.1} parent=1 // pred_check_branch
      %84 = sbr.rel (0) target = $region29
    $region28: #{tpu_custom_call.1} parent=1 // pred_region
      %85 = dma.done [#allocation4], 256
    $region29: #{tpu_custom_call.1} parent=1 // pred_fallthru
      _
    // Predicated region
    $region30: #{tpu_custom_call.1} parent=1 // pred_check
      _
    $region31: #{tpu_custom_call.1} parent=1 // pred_check_branch
      %87 = sbr.rel (0) target = $region33
    $region32: #{tpu_custom_call.1} parent=1 // pred_region
      _
    $region33: #{tpu_custom_call.1} parent=1 // pred_fallthru
      _
    %88 = vsyncpa [#allocation3], 1
    %89 = vsyncpa [#allocation6], 1
    %90 = vsyncpa [#allocation4], 1

</llo_original>
